<compile_context>
chip_gen: v7x
topology: tpu7x:2x2x1
jax: 0.10.0
libtpu: 0.0.40
codegen_flags: <defaults>
</compile_context>

<pallas_src>
import functools

import numpy as np
import jax
import jax.numpy as jnp
from jax.experimental import pallas as pl
from jax.experimental.pallas import tpu as pltpu


def _adaptive_keyword_attention_kernel(
    kw_ref,    # (Bt*K, E)    keyword embeddings for this batch block (flattened)
    ctx_ref,   # (Bt, 1, S*E) context embeddings, lane-dense layout
    w1_ref,    # (E, H)
    b1_ref,    # (1, H)
    w2_ref,    # (1, H)       second Linear weight, pre-transposed to a row
    b2_ref,    # (1,)         second Linear bias, SMEM scalar
    sel_ref,   # (Bt, Bt*K)   0/1 per-batch segment-sum matrix (grid-invariant)
    rep_ref,   # (E, S*E)     0/1 lane-replication matrix (grid-invariant)
    out_ref,   # (Bt, 1, S*E)
):
    kw = kw_ref[...]                                                  # (Bt*K, E) f32

    # ---- keyword_weight_layer: Linear(E->H) -> ReLU -> Linear(H->1) ----
    # One fused (Bt*K, E) @ (E, H) MXU matmul for the whole batch block.
    h = jnp.dot(kw, w1_ref[...], preferred_element_type=jnp.float32) + b1_ref[...]
    h = jnp.maximum(h, 0.0)                                           # (Bt*K, H)

    # Width-1 output layer stays off the MXU (an N=1 result wastes the result
    # path): VPU multiply + lane reduce against the (1, H) row.
    logits = jnp.sum(h * w2_ref[...], axis=-1, keepdims=True) + b2_ref[0]
    sig = jax.nn.sigmoid(logits)                                      # (Bt*K, 1), in (0,1)

    # ---- softmax over the K keywords of each batch element ----
    # exp() without max-subtraction is safe ONLY because the softmax inputs are
    # sigmoid outputs bounded in (0, 1).  Revisit if the activation changes.
    p = jnp.exp(sig)                                                  # (Bt*K, 1)

    # Per-batch segment sums over contiguous groups of K rows via the
    # precomputed 0/1 selection matmul (keeps everything 2-D, no reshapes).
    sel = sel_ref[...]                                                # (Bt, Bt*K)
    num = jnp.dot(sel, p * kw, preferred_element_type=jnp.float32)    # (Bt, E)
    den = jnp.dot(sel, p, preferred_element_type=jnp.float32)         # (Bt, 1)
    weighted = num / den                                              # (Bt, E)

    # ---- attention_fusion: broadcast-add the keyword mix over the sequence ----
    # Replicate `weighted` across the S positions along the lane axis via the
    # precomputed 0/1 replication matmul (keeps the single store lane-dense).
    w_tiled = jnp.dot(weighted, rep_ref[...],
                      preferred_element_type=jnp.float32)             # (Bt, S*E)

    # Single full-width (lane-dense) store of the whole block.
    out_ref[...] = (ctx_ref[...] + w_tiled[:, None, :]).astype(out_ref.dtype)


def _pick_block_batch(batch, seq_len, num_keywords, embed_dim,
                      target_bytes=4 << 20, min_steps=4):
    """Pick the batch-block size Bt.

    Constraints / goals:
      * Bt divides batch.
      * the keyword block (Bt*K, E) must have second-minor Bt*K a multiple of 8
        unless Bt == batch (block == full array)  -> enforced, not just advised.
      * ~<= `target_bytes` of ctx-in + out + keyword traffic per grid step
        (4 MiB: per-step overhead ~0.35us stays small vs HBM time on all gens).
      * keep >= `min_steps` grid steps when the batch allows it (2 steps per
        TensorCore on v7x megacore; >=2 steps for prefetch/writeback overlap).
    """
    bytes_per_b = 4 * (2 * seq_len * embed_dim + num_keywords * embed_dim)
    cap = max(1, target_bytes // bytes_per_b)
    if batch >= min_steps:
        cap = min(cap, max(1, batch // min_steps))

    def valid(d):
        return d == batch or (d * num_keywords) % 8 == 0

    divisors = [d for d in range(1, batch + 1) if batch % d == 0]
    ok = [d for d in divisors if valid(d)]          # batch itself is always valid
    under = [d for d in ok if d <= cap]
    return max(under) if under else min(ok)


def adaptive_keyword_attention(context_embeds, keyword_embeds, w1, b1, w2, b2,
                               *, block_batch=None):
    """context_embeds: [B, S, E] f32; keyword_embeds: [B, K, E] f32;
       w1: [E, H], b1: [H], w2: [H, 1], b2: [1]  (JAX y = x @ w + b convention)."""
    B, S, E = context_embeds.shape
    Bk, K, Ek = keyword_embeds.shape
    assert Bk == B and Ek == E
    H = w1.shape[1]
    SE = S * E
    assert SE % 128 == 0, "S*E must be a multiple of 128 for the lane-dense layout"

    Bt = block_batch if block_batch is not None else _pick_block_batch(B, S, K, E)
    assert B % Bt == 0, "block_batch must divide batch"
    assert Bt == B or (Bt * K) % 8 == 0, "Bt*K must be a multiple of 8 (or Bt == B)"
    num_blocks = B // Bt

    # Wrapper-side (free) layout plumbing.
    ctx3 = context_embeds.reshape(B, 1, SE)       # lane-dense: last dim S*E
    kw2 = keyword_embeds.reshape(B * K, E)        # rows = (batch, keyword) pairs
    w2_row = jnp.reshape(w2, (1, H))              # (H,1) -> (1,H) row for the VPU reduce
    b1_row = jnp.reshape(b1, (1, H))
    b2_vec = jnp.reshape(b2, (1,))                # SMEM scalar

    # Grid-invariant 0/1 matrices, built once (compile-time constants) and DMA'd
    # once (constant index_maps -> Pallas skips re-fetch across grid steps).
    sel = jnp.asarray((np.arange(Bt * K) // K) == np.arange(Bt)[:, None],
                      dtype=jnp.float32)                               # (Bt, Bt*K)
    rep = jnp.asarray((np.arange(SE) % E) == np.arange(E)[:, None],
                      dtype=jnp.float32)                               # (E, S*E)

    # VMEM budget: double-buffered ctx-in / out / kw blocks + resident constants.
    block_bytes = 4 * (2 * Bt * SE + Bt * K * E)
    const_bytes = 4 * (E * H + 2 * H + Bt * Bt * K + E * SE)
    vmem_limit = int(min(100 << 20,
                         max(32 << 20, 4 * block_bytes + 2 * const_bytes + (4 << 20))))

    out3 = pl.pallas_call(
        _adaptive_keyword_attention_kernel,
        out_shape=jax.ShapeDtypeStruct((B, 1, SE), context_embeds.dtype),
        grid_spec=pltpu.PrefetchScalarGridSpec(
            num_scalar_prefetch=0,
            grid=(num_blocks,),
            in_specs=[
                pl.BlockSpec((Bt * K, E), lambda b: (b, 0)),       # keywords (flattened)
                pl.BlockSpec((Bt, 1, SE), lambda b: (b, 0, 0)),    # context (lane-dense)
                pl.BlockSpec((E, H), lambda b: (0, 0)),            # W1 (resident)
                pl.BlockSpec((1, H), lambda b: (0, 0)),            # b1
                pl.BlockSpec((1, H), lambda b: (0, 0)),            # W2 row
                pl.BlockSpec(memory_space=pltpu.MemorySpace.SMEM), # b2 scalar
                pl.BlockSpec((Bt, Bt * K), lambda b: (0, 0)),      # sel (resident)
                pl.BlockSpec((E, SE), lambda b: (0, 0)),           # rep (resident)
            ],
            out_specs=pl.BlockSpec((Bt, 1, SE), lambda b: (b, 0, 0)),
        ),
        # Context buffer is fully overwritten per block -> donate it to the output.
        input_output_aliases={1: 0},
        compiler_params=pltpu.CompilerParams(
            dimension_semantics=("parallel",),   # batch blocks are independent
            vmem_limit_bytes=vmem_limit,
        ),
    )(kw2, ctx3, w1, b1_row, w2_row, b2_vec, sel, rep)

    return out3.reshape(B, S, E)


def reference_jax(context_embeds, keyword_embeds, w1, b1, w2, b2):
    h = jax.nn.relu(jnp.einsum("bke,eh->bkh", keyword_embeds, w1) + b1)
    logits = jnp.einsum("bkh,ho->bko", h, w2) + b2
    w = jax.nn.sigmoid(logits).squeeze(-1)                 # [B, K]
    ws = jax.nn.softmax(w, axis=-1)                        # [B, K]
    weighted = jnp.einsum("bk,bke->be", ws, keyword_embeds)
    return context_embeds + weighted[:, None, :]


if __name__ == "__main__":
    # Small shapes consistent with the module's forward pass.
    B, S, K, E, H = 2, 16, 8, 32, 32
    VOCAB = 100

    key = jax.random.PRNGKey(0)
    k_tab, k_ids, k_ctx, k_w1, k_b1, k_w2, k_b2 = jax.random.split(key, 7)

    # TODO(synk): tokenizer.convert_tokens_to_ids has no Pallas/JAX equivalent;
    # keyword ids are synthesized deterministically and the model_embedding
    # lookup is a plain-JAX gather outside the kernel.
    embedding_table = jax.random.normal(k_tab, (VOCAB, E), dtype=jnp.float32)
    keyword_ids = jax.random.randint(k_ids, (B, K), 0, VOCAB)
    keyword_embeds = jnp.take(embedding_table, keyword_ids, axis=0)     # [B, K, E]

    context_embeds = jax.random.normal(k_ctx, (B, S, E), dtype=jnp.float32)

    # keyword_weight_layer parameters (Linear(E,H), Linear(H,1)).
    w1 = jax.random.normal(k_w1, (E, H), dtype=jnp.float32) * 0.1
    b1 = jax.random.normal(k_b1, (H,), dtype=jnp.float32) * 0.1
    w2 = jax.random.normal(k_w2, (H, 1), dtype=jnp.float32) * 0.1
    b2 = jax.random.normal(k_b2, (1,), dtype=jnp.float32) * 0.1

    # Reference first (the kernel path donates its context intermediate).
    ref = reference_jax(context_embeds, keyword_embeds, w1, b1, w2, b2)

    # jit the wrapper so the reshape + aliased pallas_call live in one XLA
    # program (donation of the ctx intermediate is handled internally).
    out = jax.jit(adaptive_keyword_attention)(
        context_embeds, keyword_embeds, w1, b1, w2, b2)
    out = jax.block_until_ready(out)

    assert out.shape == (B, S, E)
    # Tolerance slightly relaxed vs 1e-5 to absorb the reformulated softmax
    # (exp-of-sigmoid, segment-sum matmul) rounding; any semantic bug would be
    # orders of magnitude larger.
    assert jnp.allclose(out, ref, atol=1e-4, rtol=1e-4), (
        f"mismatch vs reference: max abs diff = {jnp.max(jnp.abs(out - ref))}")

    print("KERNEL_OK")
</pallas_src>

<mosaic_0001>
module attributes {stable_mosaic.version = 11 : i64} {
  func.func @_adaptive_keyword_attention_kernel(%arg0: i32, %arg1: memref<16x32xf32, #tpu.memory_space<vmem>>, %arg2: memref<2x1x512xf32, #tpu.memory_space<vmem>>, %arg3: memref<32x32xf32, #tpu.memory_space<vmem>>, %arg4: memref<1x32xf32, #tpu.memory_space<vmem>>, %arg5: memref<1x32xf32, #tpu.memory_space<vmem>>, %arg6: memref<1xf32, #tpu.memory_space<smem>>, %arg7: memref<2x16xf32, #tpu.memory_space<vmem>>, %arg8: memref<32x512xf32, #tpu.memory_space<vmem>>, %arg9: memref<2x1x512xf32, #tpu.memory_space<vmem>>) attributes {dimension_semantics = [#tpu.dimension_semantics<parallel>], iteration_bounds = array<i64: 1>, scalar_prefetch = 0 : i64, scratch_operands = 0 : i64, tpu.core_type = #tpu.core_type<tc>, window_params = [{transform_indices = @transform_0, window_bounds = array<i64: 16, 32>}, {transform_indices = @transform_1, window_bounds = array<i64: 2, 1, 512>}, {pipeline_mode = #tpu.pipeline_mode<synchronous>, transform_indices = @transform_2, window_bounds = array<i64: 32, 32>}, {pipeline_mode = #tpu.pipeline_mode<synchronous>, transform_indices = @transform_3, window_bounds = array<i64: 1, 32>}, {pipeline_mode = #tpu.pipeline_mode<synchronous>, transform_indices = @transform_4, window_bounds = array<i64: 1, 32>}, {transform_indices = @transform_5, window_bounds = array<i64: 1>}, {pipeline_mode = #tpu.pipeline_mode<synchronous>, transform_indices = @transform_6, window_bounds = array<i64: 2, 16>}, {pipeline_mode = #tpu.pipeline_mode<synchronous>, transform_indices = @transform_7, window_bounds = array<i64: 32, 512>}, {transform_indices = @transform_8, window_bounds = array<i64: 2, 1, 512>}]} {
    %c0 = arith.constant 0 : index
    %c0_0 = arith.constant 0 : index
    %0 = vector.load %arg1[%c0, %c0_0] : memref<16x32xf32, #tpu.memory_space<vmem>>, vector<16x32xf32>
    %c0_1 = arith.constant 0 : index
    %c0_2 = arith.constant 0 : index
    %1 = vector.load %arg3[%c0_1, %c0_2] : memref<32x32xf32, #tpu.memory_space<vmem>>, vector<32x32xf32>
    %cst = arith.constant dense<0.000000e+00> : vector<16x32xf32>
    %2 = tpu.matmul %0, %1, %cst {dimension_numbers = #tpu.dot_dimension_numbers<[1], [0], [0], [1], [0, 0, 1, 1], [], []>} : vector<16x32xf32>, vector<32x32xf32>, vector<16x32xf32> -> vector<16x32xf32>
    %c0_3 = arith.constant 0 : index
    %c0_4 = arith.constant 0 : index
    %3 = vector.load %arg4[%c0_3, %c0_4] : memref<1x32xf32, #tpu.memory_space<vmem>>, vector<1x32xf32>
    %4 = vector.broadcast %3 : vector<1x32xf32> to vector<16x32xf32>
    %5 = arith.addf %2, %4 : vector<16x32xf32>
    %cst_5 = arith.constant 0.000000e+00 : f32
    %6 = vector.broadcast %cst_5 : f32 to vector<16x32xf32>
    %7 = arith.maximumf %5, %6 : vector<16x32xf32>
    %c0_6 = arith.constant 0 : index
    %c0_7 = arith.constant 0 : index
    %8 = vector.load %arg5[%c0_6, %c0_7] : memref<1x32xf32, #tpu.memory_space<vmem>>, vector<1x32xf32>
    %9 = vector.broadcast %8 : vector<1x32xf32> to vector<16x32xf32>
    %10 = arith.mulf %7, %9 : vector<16x32xf32>
    %cst_8 = arith.constant dense<0.000000e+00> : vector<16xf32>
    %11 = vector.multi_reduction <add>, %10, %cst_8 [1] : vector<16x32xf32> to vector<16xf32>
    %12 = vector.shape_cast %11 : vector<16xf32> to vector<16x1xf32>
    %c0_9 = arith.constant 0 : index
    %13 = memref.load %arg6[%c0_9] : memref<1xf32, #tpu.memory_space<smem>>
    %14 = vector.broadcast %13 : f32 to vector<16x1xf32>
    %15 = arith.addf %12, %14 : vector<16x1xf32>
    %16 = arith.negf %15 : vector<16x1xf32>
    %17 = math.exp %16 : vector<16x1xf32>
    %cst_10 = arith.constant 1.000000e+00 : f32
    %18 = vector.broadcast %cst_10 : f32 to vector<16x1xf32>
    %19 = arith.addf %18, %17 : vector<16x1xf32>
    %20 = arith.divf %18, %19 : vector<16x1xf32>
    %21 = math.exp %20 : vector<16x1xf32>
    %c0_11 = arith.constant 0 : index
    %c0_12 = arith.constant 0 : index
    %22 = vector.load %arg7[%c0_11, %c0_12] : memref<2x16xf32, #tpu.memory_space<vmem>>, vector<2x16xf32>
    %23 = vector.broadcast %21 : vector<16x1xf32> to vector<16x32xf32>
    %24 = arith.mulf %23, %0 : vector<16x32xf32>
    %cst_13 = arith.constant dense<0.000000e+00> : vector<2x32xf32>
    %25 = tpu.matmul %22, %24, %cst_13 {dimension_numbers = #tpu.dot_dimension_numbers<[1], [0], [0], [1], [0, 0, 1, 1], [], []>} : vector<2x16xf32>, vector<16x32xf32>, vector<2x32xf32> -> vector<2x32xf32>
    %cst_14 = arith.constant dense<0.000000e+00> : vector<2x1xf32>
    %26 = tpu.matmul %22, %21, %cst_14 {dimension_numbers = #tpu.dot_dimension_numbers<[1], [0], [0], [1], [0, 0, 1, 1], [], []>} : vector<2x16xf32>, vector<16x1xf32>, vector<2x1xf32> -> vector<2x1xf32>
    %27 = vector.broadcast %26 : vector<2x1xf32> to vector<2x32xf32>
    %28 = arith.divf %25, %27 : vector<2x32xf32>
    %c0_15 = arith.constant 0 : index
    %c0_16 = arith.constant 0 : index
    %29 = vector.load %arg8[%c0_15, %c0_16] : memref<32x512xf32, #tpu.memory_space<vmem>>, vector<32x512xf32>
    %cst_17 = arith.constant dense<0.000000e+00> : vector<2x512xf32>
    %30 = tpu.matmul %28, %29, %cst_17 {dimension_numbers = #tpu.dot_dimension_numbers<[1], [0], [0], [1], [0, 0, 1, 1], [], []>} : vector<2x32xf32>, vector<32x512xf32>, vector<2x512xf32> -> vector<2x512xf32>
    %c0_18 = arith.constant 0 : index
    %c0_19 = arith.constant 0 : index
    %c0_20 = arith.constant 0 : index
    %31 = vector.load %arg2[%c0_18, %c0_19, %c0_20] : memref<2x1x512xf32, #tpu.memory_space<vmem>>, vector<2x1x512xf32>
    %32 = vector.shape_cast %30 : vector<2x512xf32> to vector<2x1x512xf32>
    %33 = arith.addf %31, %32 : vector<2x1x512xf32>
    %c0_21 = arith.constant 0 : index
    %c0_22 = arith.constant 0 : index
    %c0_23 = arith.constant 0 : index
    %34 = vector.load %arg9[%c0_21, %c0_22, %c0_23] : memref<2x1x512xf32, #tpu.memory_space<vmem>>, vector<2x1x512xf32>
    tpu.vector_store %arg9[%c0_21, %c0_22, %c0_23], %33 {strides = array<i32>} : memref<2x1x512xf32, #tpu.memory_space<vmem>>, vector<2x1x512xf32>,
    return
  }
  func.func @transform_0(%arg0: i32) -> (i32, i32) {
    %c0_i32 = arith.constant 0 : i32
    %c0_i32_0 = arith.constant 0 : i32
    return %arg0, %c0_i32 : i32, i32
  }
  func.func @transform_1(%arg0: i32) -> (i32, i32, i32) {
    %c0_i32 = arith.constant 0 : i32
    %c0_i32_0 = arith.constant 0 : i32
    %c0_i32_1 = arith.constant 0 : i32
    return %arg0, %c0_i32, %c0_i32_0 : i32, i32, i32
  }
  func.func @transform_2(%arg0: i32) -> (i32, i32) {
    %c0_i32 = arith.constant 0 : i32
    %c0_i32_0 = arith.constant 0 : i32
    %c0_i32_1 = arith.constant 0 : i32
    return %c0_i32, %c0_i32_0 : i32, i32
  }
  func.func @transform_3(%arg0: i32) -> (i32, i32) {
    %c0_i32 = arith.constant 0 : i32
    %c0_i32_0 = arith.constant 0 : i32
    %c0_i32_1 = arith.constant 0 : i32
    return %c0_i32, %c0_i32_0 : i32, i32
  }
  func.func @transform_4(%arg0: i32) -> (i32, i32) {
    %c0_i32 = arith.constant 0 : i32
    %c0_i32_0 = arith.constant 0 : i32
    %c0_i32_1 = arith.constant 0 : i32
    return %c0_i32, %c0_i32_0 : i32, i32
  }
  func.func @transform_5(%arg0: i32) -> i32 {
    %c0_i32 = arith.constant 0 : i32
    %c0_i32_0 = arith.constant 0 : i32
    return %c0_i32 : i32
  }
  func.func @transform_6(%arg0: i32) -> (i32, i32) {
    %c0_i32 = arith.constant 0 : i32
    %c0_i32_0 = arith.constant 0 : i32
    %c0_i32_1 = arith.constant 0 : i32
    return %c0_i32, %c0_i32_0 : i32, i32
  }
  func.func @transform_7(%arg0: i32) -> (i32, i32) {
    %c0_i32 = arith.constant 0 : i32
    %c0_i32_0 = arith.constant 0 : i32
    %c0_i32_1 = arith.constant 0 : i32
    return %c0_i32, %c0_i32_0 : i32, i32
  }
  func.func @transform_8(%arg0: i32) -> (i32, i32, i32) {
    %c0_i32 = arith.constant 0 : i32
    %c0_i32_0 = arith.constant 0 : i32
    %c0_i32_1 = arith.constant 0 : i32
    return %arg0, %c0_i32, %c0_i32_0 : i32, i32, i32
  }
}

</mosaic_0001>

<llo_original>
// kernel: adaptive_keyword_attention.1
$region0: #{adaptive_keyword_attention.1}
  #allocation0 [shape = 'u32[]', space=smem, size = 0x4, offset = 0x4, fixed_abs, tag = 'smem constant byte address 0x4 - core index']
  #allocation1 [shape = 'u32[144,128]{1,0:T(1,128)}', space=vmem, size = 0x12000, scoped, tag = 'internal scratch']
  #allocation2 [shape = 'f32[1]{0:T(128)S(6)}', space=smem, size = 0x200, scoped, tag = 'scoped memory for adaptive_keyword_attention.1']
  %s0 = inlined_call_operand.vmem [shape: f32[16,32], index: 0, kind: input, shape index: {}]
  %s1 = inlined_call_operand.vmem [shape: f32[2,1,512], index: 1, kind: input, shape index: {}, may-alias: {1,8}]
  %s2 = inlined_call_operand.vmem [shape: f32[32,32], index: 2, kind: input, shape index: {}]
  %s3 = inlined_call_operand.vmem [shape: f32[1,32], index: 3, kind: input, shape index: {}]
  %s4 = inlined_call_operand.vmem [shape: f32[1,32], index: 4, kind: input, shape index: {}]
  %s5 = inlined_call_operand.<no memory space> [shape: f32[1], index: 5, kind: input, shape index: {}]
  %s6 = inlined_call_operand.vmem [shape: f32[2,16], index: 6, kind: input, shape index: {}]
  %s7 = inlined_call_operand.hbm [shape: f32[32,512], index: 7, kind: input, shape index: {}]
  %s8 = inlined_call_operand.vmem [shape: f32[2,1,512], index: 8, kind: output, shape index: {}, may-alias: {1,8}]
  %s9 = sld [smem:[#allocation0]]
  $region46: #{adaptive_keyword_attention.1} parent=0
    _
  %s11 = ssub.s32 1, %s9
  %s12 = scalar_select 0, %s11, %s9
  %13 = sst [smem:[#allocation2]] %s5
  $region1: #{adaptive_keyword_attention.1} parent=0
    #allocation3 [shape = 'u8[65536]{0}', space=vmem, size = 0x10000, scoped, tag = 'input window, operand 7, single buffered']
    #allocation4 [shape = 's32[1]{0}', space=sflag, size = 0x4, scoped, tag = 'scoped memory for adaptive_keyword_attention.1']
    %14 = vsyncpa [#allocation4], 0
    // Predicated region
    $region2: #{adaptive_keyword_attention.1} parent=1 // pred_check
      _
    $region3: #{adaptive_keyword_attention.1} parent=1 // pred_check_branch
      %16 = sbr.rel (0) target = $region5
    $region4: #{adaptive_keyword_attention.1} parent=1 // pred_region
      _
    $region5: #{adaptive_keyword_attention.1} parent=1 // pred_fallthru
      _
    // Predicated region
    $region6: #{adaptive_keyword_attention.1} parent=1 // pred_check
      _
    $region7: #{adaptive_keyword_attention.1} parent=1 // pred_check_branch
      %18 = sbr.rel (0) target = $region9
    $region8: #{adaptive_keyword_attention.1} parent=1 // pred_region
      _
    $region9: #{adaptive_keyword_attention.1} parent=1 // pred_fallthru
      _
    // Predicated region
    $region10: #{adaptive_keyword_attention.1} parent=1 // pred_check
      _
    $region11: #{adaptive_keyword_attention.1} parent=1 // pred_check_branch
      %20 = sbr.rel (0) target = $region13
    $region12: #{adaptive_keyword_attention.1} parent=1 // pred_region
      _
    $region13: #{adaptive_keyword_attention.1} parent=1 // pred_fallthru
      _
    // Predicated region
    $region14: #{adaptive_keyword_attention.1} parent=1 // pred_check
      _
    $region15: #{adaptive_keyword_attention.1} parent=1 // pred_check_branch
      %22 = sbr.rel (0) target = $region17
    $region16: #{adaptive_keyword_attention.1} parent=1 // pred_region
      _
    $region17: #{adaptive_keyword_attention.1} parent=1 // pred_fallthru
      _
    // Predicated region
    $region18: #{adaptive_keyword_attention.1} parent=1 // pred_check
      _
    $region19: #{adaptive_keyword_attention.1} parent=1 // pred_check_branch
      %24 = sbr.rel (0) target = $region21
    $region20: #{adaptive_keyword_attention.1} parent=1 // pred_region
      _
    $region21: #{adaptive_keyword_attention.1} parent=1 // pred_fallthru
      _
    // Predicated region
    $region22: #{adaptive_keyword_attention.1} parent=1 // pred_check
      _
    $region23: #{adaptive_keyword_attention.1} parent=1 // pred_check_branch
      %26 = sbr.rel (0) target = $region25
    $region24: #{adaptive_keyword_attention.1} parent=1 // pred_region
      _
    $region25: #{adaptive_keyword_attention.1} parent=1 // pred_fallthru
      _
    // Predicated region
    $region26: #{adaptive_keyword_attention.1} parent=1 // pred_check
      _
    $region27: #{adaptive_keyword_attention.1} parent=1 // pred_check_branch
      %28 = sbr.rel (0) target = $region29
    $region28: #{adaptive_keyword_attention.1} parent=1 // pred_region
      _
    $region29: #{adaptive_keyword_attention.1} parent=1 // pred_fallthru
      _
    // Predicated region
    $region30: #{adaptive_keyword_attention.1} parent=1 // pred_check
      _
    $region31: #{adaptive_keyword_attention.1} parent=1 // pred_check_branch
      %30 = sbr.rel (0) target = $region33
    $region32: #{adaptive_keyword_attention.1} parent=1 // pred_region
      %s32 = ssub.s32 2048, 2048
      %33 = vsyncadd [#allocation4], %s32
      %s34 = sshll.u32 [#allocation3], 4
      %s35 = int_to_ptr.vmem [resolvable:$true] %s34
      %40 = dma.hbm_to_vmem [thread:$0]  %s7, 2048, %s35, [#allocation4], 512, 512, 32
    $region33: #{adaptive_keyword_attention.1} parent=1 // pred_fallthru
      _
    // Predicated region
    $region34: #{adaptive_keyword_attention.1} parent=1 // pred_check
      _
    $region35: #{adaptive_keyword_attention.1} parent=1 // pred_check_branch
      %42 = sbr.rel (0) target = $region37
    $region36: #{adaptive_keyword_attention.1} parent=1 // pred_region
      %43 = dma.done [#allocation4], 2048
    $region37: #{adaptive_keyword_attention.1} parent=1 // pred_fallthru
      _
    %v44 = vld [vmem:[%s0] sm:$0xff]
    %v45 = vld [vmem:[%s0 + $0x8] sm:$0xff]
    %v46 = vld [vmem:[%s2] sm:$0xff]
    %v47 = vld [vmem:[%s2 + $0x8] sm:$0xff]
    %v48 = vld [vmem:[%s2 + $0x10] sm:$0xff]
    %v49 = vld [vmem:[%s2 + $0x18] sm:$0xff]
    %v50 = vld [vmem:[%s3] sm:$0x1]
    %v52 = vlaneseq
    %v53 = vshrl.u32 %v52, 7
    %v54 = vsub.s32 0, %v53
    %v55 = vrot.slane %v50, %v54
    %vm57 = vcmask 261120
    %v59 = vsel %vm57, %v44, 0
    %v62 = vsel %vm57, %v45, 0
    %64 = vmatprep.subr.mxu0 0.0
    %65 = vmatpush1.msra.mxu0 %v46
    %66 = vmatprep.subr.mxu0 0.0
    %67 = vmatpush1.msra.mxu0 %v47
    %68 = vmatprep.subr.mxu0 0.0
    %69 = vmatpush1.msra.mxu0 %v48
    %70 = vmatprep.subr.mxu0 0.0
    %71 = vmatpush1.msra.mxu0 %v49
    %72 = vmatprep.subr.mxu0 0.0
    %73 = vmatpush1.msra.mxu0 0.0
    %74 = vmatprep.subr.mxu0 0.0
    %75 = vmatpush1.msra.mxu0 0.0
    %76 = vmatprep.subr.mxu0 0.0
    %77 = vmatpush1.msra.mxu0 0.0
    %78 = vmatprep.subr.mxu0 0.0
    %79 = vmatpush1.msra.mxu0 0.0
    %80 = vmatprep.subr.mxu0 0.0
    %81 = vmatpush1.msra.mxu0 0.0
    %82 = vmatprep.subr.mxu0 0.0
    %83 = vmatpush1.msra.mxu0 0.0
    %84 = vmatprep.subr.mxu0 0.0
    %85 = vmatpush1.msra.mxu0 0.0
    %86 = vmatprep.subr.mxu0 0.0
    %87 = vmatpush1.msra.mxu0 0.0
    %88 = vmatprep.subr.mxu0 0.0
    %89 = vmatpush1.msra.mxu0 0.0
    %90 = vmatprep.subr.mxu0 0.0
    %91 = vmatpush1.msra.mxu0 0.0
    %92 = vmatprep.subr.mxu0 0.0
    %93 = vmatpush1.msra.mxu0 0.0
    %94 = vmatprep.subr.mxu0 0.0
    %95 = vmatpush1.msra.mxu0 0.0
    %96 = vmatprep.subr.mxu0 0.0
    %97 = vmatpush1.msra.mxu0 0.0
    %98 = vmatprep.subr.mxu0 0.0
    %99 = vmatpush1.msra.mxu0 0.0
    %100 = vmatprep.subr.mxu0 0.0
    %101 = vmatpush1.msra.mxu0 0.0
    %102 = vmatprep.subr.mxu0 0.0
    %103 = vmatpush1.msra.mxu0 0.0
    %104 = vmatprep.subr.mxu0 0.0
    %105 = vmatpush1.msra.mxu0 0.0
    %106 = vmatprep.subr.mxu0 0.0
    %107 = vmatpush1.msra.mxu0 0.0
    %108 = vmatprep.subr.mxu0 0.0
    %109 = vmatpush1.msra.mxu0 0.0
    %110 = vmatprep.subr.mxu0 0.0
    %111 = vmatpush1.msra.mxu0 0.0
    %112 = vmatprep.subr.mxu0 0.0
    %113 = vmatpush1.msra.mxu0 0.0
    %114 = vmatprep.subr.mxu0 0.0
    %115 = vmatpush1.msra.mxu0 0.0
    %116 = vmatprep.subr.mxu0 0.0
    %117 = vmatpush1.msra.mxu0 0.0
    %118 = vmatprep.subr.mxu0 0.0
    %119 = vmatpush1.msra.mxu0 0.0
    %120 = vmatprep.subr.mxu0 0.0
    %121 = vmatpush1.msra.mxu0 0.0
    %122 = vmatprep.subr.mxu0 0.0
    %123 = vmatpush1.msra.mxu0 0.0
    %124 = vmatprep.subr.mxu0 0.0
    %125 = vmatpush1.msra.mxu0 0.0
    %126 = vmatprep.subr.mxu0 0.0
    %127 = vmatpush1.msra.mxu0 0.0
    %128 = vmatprep.mubr.f32.mxu0 0.0
    %129 = vmatmul.mubr.f32.gmra.mrb[0].mxu0 %v59
    %v130 = vpop.f32.mrb[0].mxu0
    %v131 = vadd.f32 %v55, %v130
    %v132 = vpop.f32.mrb[0].mxu0
    %133 = vmatprep.mubr.f32.mxu0 0.0
    %134 = vmatmul.mubr.f32.gmra.mrb[0].mxu0 %v62
    %v135 = vpop.f32.mrb[0].mxu0
    %v136 = vadd.f32 %v55, %v135
    %v137 = vpop.f32.mrb[0].mxu0
    %138 = vdwg.mxu0
    %v139 = vmax.f32 %v131, 0.0
    %v140 = vmax.f32 %v136, 0.0
    %v141 = vld [vmem:[%s4] sm:$0x1]
    %v143 = vlaneseq
    %v144 = vshrl.u32 %v143, 7
    %v145 = vsub.s32 0, %v144
    %v146 = vrot.slane %v141, %v145
    %v148 = vmul.f32 %v139, %v146
    %v149 = vmul.f32 %v140, %v146
    %v150 = vsel %vm57, %v148, 0.0
    %151 = vadd.xlane.f32.xlu0 %v150
    %v152 = vpop.xlane.xlu0 %151
    %v153 = vsel %vm57, %v149, 0.0
    %154 = vadd.xlane.f32.xlu0 %v153
    %v155 = vpop.xlane.xlu0 %154
    %s156 = sld [smem:[#allocation2]]
    %v157 = vstv %s156
    %v158 = vadd.f32 %v152, %v157
    %v159 = vadd.f32 %v155, %v157
    %v160 = vxor.u32 %v158, 2147483648
    %v161 = vxor.u32 %v159, 2147483648
    %v162 = vmul.f32 %v160, 1.442695
    %v163 = vpow.pop %v162
    %v164 = vmul.f32 %v161, 1.442695
    %v165 = vpow.pop %v164
    %v166 = vadd.f32 %v163, 1.0
    %v167 = vadd.f32 %v165, 1.0
    %v168 = vrcp.pop %v166
    %v169 = vmul.f32 1.0, %v168
    %v170 = vrcp.pop %v167
    %v171 = vmul.f32 1.0, %v170
    %v172 = vmul.f32 %v169, 1.442695
    %v173 = vpow.pop %v172
    %v174 = vmul.f32 %v171, 1.442695
    %v175 = vpow.pop %v174
    %v176 = vld [vmem:[%s6] sm:$0x3]
    %v177 = vmul.f32 %v173, %v44
    %v178 = vmul.f32 %v175, %v45
    %vm179 = vcmask 130048
    %v181 = vsel %vm179, %v176, 0
    %183 = vmatprep.subr.mxu0 0.0
    %184 = vmatpush1.msra.mxu0 %v177
    %185 = vmatprep.subr.mxu0 0.0
    %186 = vmatpush1.msra.mxu0 %v178
    %187 = vmatprep.subr.mxu0 0.0
    %188 = vmatpush1.msra.mxu0 0.0
    %189 = vmatprep.subr.mxu0 0.0
    %190 = vmatpush1.msra.mxu0 0.0
    %191 = vmatprep.subr.mxu0 0.0
    %192 = vmatpush1.msra.mxu0 0.0
    %193 = vmatprep.subr.mxu0 0.0
    %194 = vmatpush1.msra.mxu0 0.0
    %195 = vmatprep.subr.mxu0 0.0
    %196 = vmatpush1.msra.mxu0 0.0
    %197 = vmatprep.subr.mxu0 0.0
    %198 = vmatpush1.msra.mxu0 0.0
    %199 = vmatprep.subr.mxu0 0.0
    %200 = vmatpush1.msra.mxu0 0.0
    %201 = vmatprep.subr.mxu0 0.0
    %202 = vmatpush1.msra.mxu0 0.0
    %203 = vmatprep.subr.mxu0 0.0
    %204 = vmatpush1.msra.mxu0 0.0
    %205 = vmatprep.subr.mxu0 0.0
    %206 = vmatpush1.msra.mxu0 0.0
    %207 = vmatprep.subr.mxu0 0.0
    %208 = vmatpush1.msra.mxu0 0.0
    %209 = vmatprep.subr.mxu0 0.0
    %210 = vmatpush1.msra.mxu0 0.0
    %211 = vmatprep.subr.mxu0 0.0
    %212 = vmatpush1.msra.mxu0 0.0
    %213 = vmatprep.subr.mxu0 0.0
    %214 = vmatpush1.msra.mxu0 0.0
    %215 = vmatprep.subr.mxu0 0.0
    %216 = vmatpush1.msra.mxu0 0.0
    %217 = vmatprep.subr.mxu0 0.0
    %218 = vmatpush1.msra.mxu0 0.0
    %219 = vmatprep.subr.mxu0 0.0
    %220 = vmatpush1.msra.mxu0 0.0
    %221 = vmatprep.subr.mxu0 0.0
    %222 = vmatpush1.msra.mxu0 0.0
    %223 = vmatprep.subr.mxu0 0.0
    %224 = vmatpush1.msra.mxu0 0.0
    %225 = vmatprep.subr.mxu0 0.0
    %226 = vmatpush1.msra.mxu0 0.0
    %227 = vmatprep.subr.mxu0 0.0
    %228 = vmatpush1.msra.mxu0 0.0
    %229 = vmatprep.subr.mxu0 0.0
    %230 = vmatpush1.msra.mxu0 0.0
    %231 = vmatprep.subr.mxu0 0.0
    %232 = vmatpush1.msra.mxu0 0.0
    %233 = vmatprep.subr.mxu0 0.0
    %234 = vmatpush1.msra.mxu0 0.0
    %235 = vmatprep.subr.mxu0 0.0
    %236 = vmatpush1.msra.mxu0 0.0
    %237 = vmatprep.subr.mxu0 0.0
    %238 = vmatpush1.msra.mxu0 0.0
    %239 = vmatprep.subr.mxu0 0.0
    %240 = vmatpush1.msra.mxu0 0.0
    %241 = vmatprep.subr.mxu0 0.0
    %242 = vmatpush1.msra.mxu0 0.0
    %243 = vmatprep.subr.mxu0 0.0
    %244 = vmatpush1.msra.mxu0 0.0
    %245 = vmatprep.subr.mxu0 0.0
    %246 = vmatpush1.msra.mxu0 0.0
    %247 = vmatprep.mubr.f32.mxu0 0.0
    %248 = vmatmul.mubr.f32.gmra.mrb[0].mxu0 %v181
    %v249 = vpop.f32.mrb[0].mxu0
    %v250 = vadd.f32 0.0, %v249
    %v251 = vpop.f32.mrb[0].mxu0
    %252 = vdwg.mxu0
    %253 = vmatprep.subr.mxu0 0.0
    %254 = vmatpush1.msra.mxu0 %v173
    %255 = vmatprep.subr.mxu0 0.0
    %256 = vmatpush1.msra.mxu0 %v175
    %257 = vmatprep.subr.mxu0 0.0
    %258 = vmatpush1.msra.mxu0 0.0
    %259 = vmatprep.subr.mxu0 0.0
    %260 = vmatpush1.msra.mxu0 0.0
    %261 = vmatprep.subr.mxu0 0.0
    %262 = vmatpush1.msra.mxu0 0.0
    %263 = vmatprep.subr.mxu0 0.0
    %264 = vmatpush1.msra.mxu0 0.0
    %265 = vmatprep.subr.mxu0 0.0
    %266 = vmatpush1.msra.mxu0 0.0
    %267 = vmatprep.subr.mxu0 0.0
    %268 = vmatpush1.msra.mxu0 0.0
    %269 = vmatprep.subr.mxu0 0.0
    %270 = vmatpush1.msra.mxu0 0.0
    %271 = vmatprep.subr.mxu0 0.0
    %272 = vmatpush1.msra.mxu0 0.0
    %273 = vmatprep.subr.mxu0 0.0
    %274 = vmatpush1.msra.mxu0 0.0
    %275 = vmatprep.subr.mxu0 0.0
    %276 = vmatpush1.msra.mxu0 0.0
    %277 = vmatprep.subr.mxu0 0.0
    %278 = vmatpush1.msra.mxu0 0.0
    %279 = vmatprep.subr.mxu0 0.0
    %280 = vmatpush1.msra.mxu0 0.0
    %281 = vmatprep.subr.mxu0 0.0
    %282 = vmatpush1.msra.mxu0 0.0
    %283 = vmatprep.subr.mxu0 0.0
    %284 = vmatpush1.msra.mxu0 0.0
    %285 = vmatprep.subr.mxu0 0.0
    %286 = vmatpush1.msra.mxu0 0.0
    %287 = vmatprep.subr.mxu0 0.0
    %288 = vmatpush1.msra.mxu0 0.0
    %289 = vmatprep.subr.mxu0 0.0
    %290 = vmatpush1.msra.mxu0 0.0
    %291 = vmatprep.subr.mxu0 0.0
    %292 = vmatpush1.msra.mxu0 0.0
    %293 = vmatprep.subr.mxu0 0.0
    %294 = vmatpush1.msra.mxu0 0.0
    %295 = vmatprep.subr.mxu0 0.0
    %296 = vmatpush1.msra.mxu0 0.0
    %297 = vmatprep.subr.mxu0 0.0
    %298 = vmatpush1.msra.mxu0 0.0
    %299 = vmatprep.subr.mxu0 0.0
    %300 = vmatpush1.msra.mxu0 0.0
    %301 = vmatprep.subr.mxu0 0.0
    %302 = vmatpush1.msra.mxu0 0.0
    %303 = vmatprep.subr.mxu0 0.0
    %304 = vmatpush1.msra.mxu0 0.0
    %305 = vmatprep.subr.mxu0 0.0
    %306 = vmatpush1.msra.mxu0 0.0
    %307 = vmatprep.subr.mxu0 0.0
    %308 = vmatpush1.msra.mxu0 0.0
    %309 = vmatprep.subr.mxu0 0.0
    %310 = vmatpush1.msra.mxu0 0.0
    %311 = vmatprep.subr.mxu0 0.0
    %312 = vmatpush1.msra.mxu0 0.0
    %313 = vmatprep.subr.mxu0 0.0
    %314 = vmatpush1.msra.mxu0 0.0
    %315 = vmatprep.subr.mxu0 0.0
    %316 = vmatpush1.msra.mxu0 0.0
    %317 = vmatprep.mubr.f32.mxu0 0.0
    %318 = vmatmul.mubr.f32.gmra.mrb[0].mxu0 %v181
    %v319 = vpop.f32.mrb[0].mxu0
    %v320 = vadd.f32 0.0, %v319
    %v321 = vpop.f32.mrb[0].mxu0
    %322 = vdwg.mxu0
    %324 = vset.pattern.permute.xlu0 0
    %325 = vperm.xlu0 %324, %v320
    %v326 = vpop.permute.xlu0 %325
    %v328 = vrcp.pop %v326
    %v329 = vmul.f32 %v250, %v328
    %v330 = vld [vmem:[#allocation3] sm:$0xff]
    %v331 = vld [vmem:[#allocation3 + $0x8] sm:$0xff]
    %v332 = vld [vmem:[#allocation3 + $0x10] sm:$0xff]
    %v333 = vld [vmem:[#allocation3 + $0x18] sm:$0xff]
    %v334 = vld [vmem:[#allocation3 + $0x20] sm:$0xff]
    %v335 = vld [vmem:[#allocation3 + $0x28] sm:$0xff]
    %v336 = vld [vmem:[#allocation3 + $0x30] sm:$0xff]
    %v337 = vld [vmem:[#allocation3 + $0x38] sm:$0xff]
    %v338 = vld [vmem:[#allocation3 + $0x40] sm:$0xff]
    %v339 = vld [vmem:[#allocation3 + $0x48] sm:$0xff]
    %v340 = vld [vmem:[#allocation3 + $0x50] sm:$0xff]
    %v341 = vld [vmem:[#allocation3 + $0x58] sm:$0xff]
    %v342 = vld [vmem:[#allocation3 + $0x60] sm:$0xff]
    %v343 = vld [vmem:[#allocation3 + $0x68] sm:$0xff]
    %v344 = vld [vmem:[#allocation3 + $0x70] sm:$0xff]
    %v345 = vld [vmem:[#allocation3 + $0x78] sm:$0xff]
    %v347 = vsel %vm57, %v329, 0
    %349 = vmatprep.subr.mxu0 %v331
    %350 = vmatpush1.msra.mxu0 %v330
    %351 = vmatprep.subr.mxu0 %v335
    %352 = vmatpush1.msra.mxu0 %v334
    %353 = vmatprep.subr.mxu0 %v339
    %354 = vmatpush1.msra.mxu0 %v338
    %355 = vmatprep.subr.mxu0 %v343
    %356 = vmatpush1.msra.mxu0 %v342
    %357 = vmatprep.subr.mxu0 0.0
    %358 = vmatpush1.msra.mxu0 0.0
    %359 = vmatprep.subr.mxu0 0.0
    %360 = vmatpush1.msra.mxu0 0.0
    %361 = vmatprep.subr.mxu0 0.0
    %362 = vmatpush1.msra.mxu0 0.0
    %363 = vmatprep.subr.mxu0 0.0
    %364 = vmatpush1.msra.mxu0 0.0
    %365 = vmatprep.subr.mxu0 0.0
    %366 = vmatpush1.msra.mxu0 0.0
    %367 = vmatprep.subr.mxu0 0.0
    %368 = vmatpush1.msra.mxu0 0.0
    %369 = vmatprep.subr.mxu0 0.0
    %370 = vmatpush1.msra.mxu0 0.0
    %371 = vmatprep.subr.mxu0 0.0
    %372 = vmatpush1.msra.mxu0 0.0
    %373 = vmatprep.subr.mxu0 0.0
    %374 = vmatpush1.msra.mxu0 0.0
    %375 = vmatprep.subr.mxu0 0.0
    %376 = vmatpush1.msra.mxu0 0.0
    %377 = vmatprep.subr.mxu0 0.0
    %378 = vmatpush1.msra.mxu0 0.0
    %379 = vmatprep.subr.mxu0 0.0
    %380 = vmatpush1.msra.mxu0 0.0
    %381 = vmatprep.subr.mxu0 0.0
    %382 = vmatpush1.msra.mxu0 0.0
    %383 = vmatprep.subr.mxu0 0.0
    %384 = vmatpush1.msra.mxu0 0.0
    %385 = vmatprep.subr.mxu0 0.0
    %386 = vmatpush1.msra.mxu0 0.0
    %387 = vmatprep.subr.mxu0 0.0
    %388 = vmatpush1.msra.mxu0 0.0
    %389 = vmatprep.subr.mxu0 0.0
    %390 = vmatpush1.msra.mxu0 0.0
    %391 = vmatprep.subr.mxu0 0.0
    %392 = vmatpush1.msra.mxu0 0.0
    %393 = vmatprep.subr.mxu0 0.0
    %394 = vmatpush1.msra.mxu0 0.0
    %395 = vmatprep.subr.mxu0 0.0
    %396 = vmatpush1.msra.mxu0 0.0
    %397 = vmatprep.subr.mxu0 0.0
    %398 = vmatpush1.msra.mxu0 0.0
    %399 = vmatprep.subr.mxu0 0.0
    %400 = vmatpush1.msra.mxu0 0.0
    %401 = vmatprep.subr.mxu0 0.0
    %402 = vmatpush1.msra.mxu0 0.0
    %403 = vmatprep.subr.mxu0 0.0
    %404 = vmatpush1.msra.mxu0 0.0
    %405 = vmatprep.subr.mxu0 0.0
    %406 = vmatpush1.msra.mxu0 0.0
    %407 = vmatprep.subr.mxu0 0.0
    %408 = vmatpush1.msra.mxu0 0.0
    %409 = vmatprep.subr.mxu0 0.0
    %410 = vmatpush1.msra.mxu0 0.0
    %411 = vmatprep.subr.mxu0 0.0
    %412 = vmatpush1.msra.mxu0 0.0
    %413 = vmatprep.mubr.f32.mxu0 0.0
    %414 = vmatmul.mubr.f32.gmra.mrb[0].mxu0 %v347
    %v415 = vpop.f32.mrb[0].mxu0
    %v416 = vadd.f32 0.0, %v415
    %v417 = vpop.f32.mrb[0].mxu0
    %v418 = vadd.f32 0.0, %v417
    %419 = vdwg.mxu0
    %420 = vmatprep.subr.mxu0 %v333
    %421 = vmatpush1.msra.mxu0 %v332
    %422 = vmatprep.subr.mxu0 %v337
    %423 = vmatpush1.msra.mxu0 %v336
    %424 = vmatprep.subr.mxu0 %v341
    %425 = vmatpush1.msra.mxu0 %v340
    %426 = vmatprep.subr.mxu0 %v345
    %427 = vmatpush1.msra.mxu0 %v344
    %428 = vmatprep.subr.mxu0 0.0
    %429 = vmatpush1.msra.mxu0 0.0
    %430 = vmatprep.subr.mxu0 0.0
    %431 = vmatpush1.msra.mxu0 0.0
    %432 = vmatprep.subr.mxu0 0.0
    %433 = vmatpush1.msra.mxu0 0.0
    %434 = vmatprep.subr.mxu0 0.0
    %435 = vmatpush1.msra.mxu0 0.0
    %436 = vmatprep.subr.mxu0 0.0
    %437 = vmatpush1.msra.mxu0 0.0
    %438 = vmatprep.subr.mxu0 0.0
    %439 = vmatpush1.msra.mxu0 0.0
    %440 = vmatprep.subr.mxu0 0.0
    %441 = vmatpush1.msra.mxu0 0.0
    %442 = vmatprep.subr.mxu0 0.0
    %443 = vmatpush1.msra.mxu0 0.0
    %444 = vmatprep.subr.mxu0 0.0
    %445 = vmatpush1.msra.mxu0 0.0
    %446 = vmatprep.subr.mxu0 0.0
    %447 = vmatpush1.msra.mxu0 0.0
    %448 = vmatprep.subr.mxu0 0.0
    %449 = vmatpush1.msra.mxu0 0.0
    %450 = vmatprep.subr.mxu0 0.0
    %451 = vmatpush1.msra.mxu0 0.0
    %452 = vmatprep.subr.mxu0 0.0
    %453 = vmatpush1.msra.mxu0 0.0
    %454 = vmatprep.subr.mxu0 0.0
    %455 = vmatpush1.msra.mxu0 0.0
    %456 = vmatprep.subr.mxu0 0.0
    %457 = vmatpush1.msra.mxu0 0.0
    %458 = vmatprep.subr.mxu0 0.0
    %459 = vmatpush1.msra.mxu0 0.0
    %460 = vmatprep.subr.mxu0 0.0
    %461 = vmatpush1.msra.mxu0 0.0
    %462 = vmatprep.subr.mxu0 0.0
    %463 = vmatpush1.msra.mxu0 0.0
    %464 = vmatprep.subr.mxu0 0.0
    %465 = vmatpush1.msra.mxu0 0.0
    %466 = vmatprep.subr.mxu0 0.0
    %467 = vmatpush1.msra.mxu0 0.0
    %468 = vmatprep.subr.mxu0 0.0
    %469 = vmatpush1.msra.mxu0 0.0
    %470 = vmatprep.subr.mxu0 0.0
    %471 = vmatpush1.msra.mxu0 0.0
    %472 = vmatprep.subr.mxu0 0.0
    %473 = vmatpush1.msra.mxu0 0.0
    %474 = vmatprep.subr.mxu0 0.0
    %475 = vmatpush1.msra.mxu0 0.0
    %476 = vmatprep.subr.mxu0 0.0
    %477 = vmatpush1.msra.mxu0 0.0
    %478 = vmatprep.subr.mxu0 0.0
    %479 = vmatpush1.msra.mxu0 0.0
    %480 = vmatprep.subr.mxu0 0.0
    %481 = vmatpush1.msra.mxu0 0.0
    %482 = vmatprep.subr.mxu0 0.0
    %483 = vmatpush1.msra.mxu0 0.0
    %484 = vmatprep.mubr.f32.mxu0 0.0
    %485 = vmatmul.mubr.f32.gmra.mrb[0].mxu0 %v347
    %v486 = vpop.f32.mrb[0].mxu0
    %v487 = vadd.f32 0.0, %v486
    %v488 = vpop.f32.mrb[0].mxu0
    %v489 = vadd.f32 0.0, %v488
    %490 = vdwg.mxu0
    %v491 = vld [vmem:[%s1] sm:$0xf]
    %v492 = vld [vmem:[%s1 + $0x4] sm:$0xf]
    %v497 = vcombine.low %v416, %v418
    %v498 = vcombine.low %v487, %v489
    %v500 = vunpack.c.l.s4 1966171168
    %v501 = vunpack.c.0.s8 %v500
    %v502 = vlaneseq
    %v503 = vshrl.u32 %v502, 7
    %v504 = vsub.s32 %v501, %v503
    %v505 = vrot.slane %v497, %v504
    %v507 = vunpack.c.l.s4 1966171168
    %v508 = vunpack.c.0.s8 %v507
    %v509 = vlaneseq
    %v510 = vshrl.u32 %v509, 7
    %v511 = vsub.s32 %v508, %v510
    %v512 = vrot.slane %v498, %v511
    %v513 = vcombine.low %v505, %v512
    %v514 = vcombine.high %v505, %v512
    %v516 = vunpack.c.l.s4 1966171168
    %v517 = vunpack.c.0.s8 %v516
    %v518 = vlaneseq
    %v519 = vshrl.u32 %v518, 7
    %v520 = vsub.s32 %v517, %v519
    %v521 = vrot.slane %v513, %v520
    %v523 = vunpack.c.l.s4 1966171168
    %v524 = vunpack.c.0.s8 %v523
    %v525 = vlaneseq
    %v526 = vshrl.u32 %v525, 7
    %v527 = vsub.s32 %v524, %v526
    %v528 = vrot.slane %v514, %v527
    %v531 = vadd.f32 %v491, %v521
    %v532 = vadd.f32 %v492, %v528
    %v533 = vlaneseq
    %vm534 = vcmp.ge.s32.totalorder %v533, 0
    %vm535 = vcmp.lt.s32.totalorder %v533, 512
    %vm536 = vmand %vm534, %vm535
    %537 = vst.msk [vmem:[%s8] sm:$0xf] %vm536, %v531
    %538 = vst.msk [vmem:[%s8 + $0x4] sm:$0xf] %vm536, %v532
    // Predicated region
    $region38: #{adaptive_keyword_attention.1} parent=1 // pred_check
      _
    $region39: #{adaptive_keyword_attention.1} parent=1 // pred_check_branch
      %540 = sbr.rel (0) target = $region41
    $region40: #{adaptive_keyword_attention.1} parent=1 // pred_region
      _
    $region41: #{adaptive_keyword_attention.1} parent=1 // pred_fallthru
      _
    // Predicated region
    $region42: #{adaptive_keyword_attention.1} parent=1 // pred_check
      _
    $region43: #{adaptive_keyword_attention.1} parent=1 // pred_check_branch
      %542 = sbr.rel (0) target = $region45
    $region44: #{adaptive_keyword_attention.1} parent=1 // pred_region
      _
    $region45: #{adaptive_keyword_attention.1} parent=1 // pred_fallthru
      _
    %543 = vsyncpa [#allocation4], 1

</llo_original>
